<compile_context>
chip_gen: v7x
topology: tpu7x:2x2x1
jax: 0.10.0
libtpu: 0.0.40
codegen_flags: <defaults>
</compile_context>

<pallas_src>
import functools

import jax
import jax.numpy as jnp
from jax.experimental import pallas as pl
from jax.experimental.pallas import tpu as pltpu

ALPHA = 0.25
GAMMA = 2.0
LANE = 128
SUB = 8            # f32 sublane tile
TILE_M_MAX = 2048  # ~1 MiB f32 block per input; 2 inputs x 2 buffers = 4 MiB VMEM
NCORES = 2         # leading "parallel" grid axis (v7x megacore; harmless elsewhere)


def _round_up(x, m):
    return (x + m - 1) // m * m


def _focal_loss_kernel(x_ref, t_ref, out_ref, *, alpha, gamma, n_valid, tile_m, steps):
    c = pl.program_id(0)
    i = pl.program_id(1)

    @pl.when(i == 0)
    def _():
        out_ref[...] = jnp.zeros_like(out_ref)

    x = x_ref[...].astype(jnp.float32)
    t = t_ref[...].astype(jnp.float32)

    # Numerically-stable BCE-with-logits (matches F.binary_cross_entropy_with_logits):
    #   bce = max(x, 0) - x*t + log1p(exp(-|x|))
    bce = jnp.maximum(x, 0.0) - x * t + jnp.log1p(jnp.exp(-jnp.abs(x)))
    pt = jnp.exp(-bce)
    u = 1.0 - pt
    if float(gamma) == 2.0:
        mod = u * u                      # avoid exp(g*log(u)) pow lowering
    else:
        mod = jnp.maximum(u, 0.0) ** gamma
    f_loss = alpha * mod * bce

    # Mask out zero-padded tail elements (flat row-major index vs. valid count).
    row0 = (c * steps + i) * tile_m
    rows = row0 + jax.lax.broadcasted_iota(jnp.int32, (tile_m, LANE), 0)
    cols = jax.lax.broadcasted_iota(jnp.int32, (tile_m, LANE), 1)
    f_loss = jnp.where(rows * LANE + cols < n_valid, f_loss, 0.0)

    # Per-lane/per-sublane vector partial sums (VPU adds only on the hot path);
    # the cross-lane reduce + divide-by-n happens once in the wrapper.
    out_ref[...] += f_loss.reshape(tile_m // SUB, SUB, LANE).sum(axis=0)


def focal_loss(pos_out, neg_out, alpha=ALPHA, gamma=GAMMA):
    """Focal loss with logits. pos_out: logits, neg_out: targets; same shape."""
    assert pos_out.shape == neg_out.shape
    n = pos_out.size

    rows = pl.cdiv(n, LANE)
    rows_per_core = pl.cdiv(rows, NCORES)
    tile_m = min(TILE_M_MAX, _round_up(rows_per_core, 2 * SUB))  # mult of 16 (bf16-safe)
    steps = pl.cdiv(rows_per_core, tile_m)
    rows_padded = NCORES * steps * tile_m
    n_padded = rows_padded * LANE

    x = jnp.pad(pos_out.reshape(-1), (0, n_padded - n)).reshape(rows_padded, LANE)
    t = jnp.pad(neg_out.reshape(-1), (0, n_padded - n)).reshape(rows_padded, LANE)

    kernel = functools.partial(
        _focal_loss_kernel,
        alpha=float(alpha), gamma=float(gamma),
        n_valid=n, tile_m=tile_m, steps=steps,
    )

    partials = pl.pallas_call(
        kernel,
        out_shape=jax.ShapeDtypeStruct((NCORES * SUB, LANE), jnp.float32),
        grid_spec=pltpu.PrefetchScalarGridSpec(
            num_scalar_prefetch=0,
            grid=(NCORES, steps),
            in_specs=[
                pl.BlockSpec((tile_m, LANE), lambda c, i: (c * steps + i, 0)),
                pl.BlockSpec((tile_m, LANE), lambda c, i: (c * steps + i, 0)),
            ],
            out_specs=pl.BlockSpec((SUB, LANE), lambda c, i: (c, 0)),
        ),
        compiler_params=pltpu.CompilerParams(
            dimension_semantics=("parallel", "arbitrary"),
        ),
    )(x, t)

    return jnp.sum(partials) / jnp.float32(n)


def _focal_loss_ref(pos_out, neg_out, alpha=ALPHA, gamma=GAMMA):
    x = pos_out.astype(jnp.float32)
    t = neg_out.astype(jnp.float32)
    bce = jnp.maximum(x, 0.0) - x * t + jnp.log1p(jnp.exp(-jnp.abs(x)))
    pt = jnp.exp(-bce)
    return jnp.mean(alpha * (1.0 - pt) ** gamma * bce)


if __name__ == "__main__":
    key = jax.random.PRNGKey(0)
    k1, k2, k3, k4 = jax.random.split(key, 4)

    # NCHW inputs: logits and targets.
    shape = (2, 4, 16, 16)
    pos_out = jax.random.normal(k1, shape, dtype=jnp.float32)   # logits
    neg_out = jax.random.uniform(k2, shape, dtype=jnp.float32)  # targets in [0, 1]

    loss = focal_loss(pos_out, neg_out)
    jax.block_until_ready(loss)
    ref = _focal_loss_ref(pos_out, neg_out)
    assert jnp.allclose(loss, ref, rtol=1e-5, atol=1e-6), (loss, ref)

    # Ragged shape (exercises padding + mask path).
    shape2 = (3, 5, 7, 11)
    pos2 = jax.random.normal(k3, shape2, dtype=jnp.float32)
    neg2 = jax.random.uniform(k4, shape2, dtype=jnp.float32)
    loss2 = focal_loss(pos2, neg2)
    jax.block_until_ready(loss2)
    ref2 = _focal_loss_ref(pos2, neg2)
    assert jnp.allclose(loss2, ref2, rtol=1e-5, atol=1e-6), (loss2, ref2)

    print("KERNEL_OK")
</pallas_src>

<mosaic_0001>
module attributes {stable_mosaic.version = 11 : i64} {
  func.func @_focal_loss_kernel(%arg0: i32, %arg1: i32, %arg2: memref<16x128xf32, #tpu.memory_space<vmem>>, %arg3: memref<16x128xf32, #tpu.memory_space<vmem>>, %arg4: memref<8x128xf32, #tpu.memory_space<vmem>>) attributes {dimension_semantics = [#tpu.dimension_semantics<parallel>, #tpu.dimension_semantics<arbitrary>], iteration_bounds = array<i64: 2, 1>, scalar_prefetch = 0 : i64, scratch_operands = 0 : i64, tpu.core_type = #tpu.core_type<tc>, window_params = [{transform_indices = @transform_0, window_bounds = array<i64: 16, 128>}, {transform_indices = @transform_1, window_bounds = array<i64: 16, 128>}, {transform_indices = @transform_2, window_bounds = array<i64: 8, 128>}]} {
    %c0_i32 = arith.constant 0 : i32
    %0 = arith.cmpi eq, %arg1, %c0_i32 : i32
    %1 = arith.extui %0 : i1 to i32
    %c0_i32_0 = arith.constant 0 : i32
    %2 = arith.cmpi ne, %1, %c0_i32_0 : i32
    scf.if %2 {
      %cst_14 = arith.constant 0.000000e+00 : f32
      %43 = vector.broadcast %cst_14 : f32 to vector<8x128xf32>
      %c0_15 = arith.constant 0 : index
      %c0_16 = arith.constant 0 : index
      %44 = vector.load %arg4[%c0_15, %c0_16] : memref<8x128xf32, #tpu.memory_space<vmem>>, vector<8x128xf32>
      tpu.vector_store %arg4[%c0_15, %c0_16], %43 {strides = array<i32>} : memref<8x128xf32, #tpu.memory_space<vmem>>, vector<8x128xf32>,
    } else {
    }
    %c0 = arith.constant 0 : index
    %c0_1 = arith.constant 0 : index
    %3 = vector.load %arg2[%c0, %c0_1] : memref<16x128xf32, #tpu.memory_space<vmem>>, vector<16x128xf32>
    %c0_2 = arith.constant 0 : index
    %c0_3 = arith.constant 0 : index
    %4 = vector.load %arg3[%c0_2, %c0_3] : memref<16x128xf32, #tpu.memory_space<vmem>>, vector<16x128xf32>
    %cst = arith.constant 0.000000e+00 : f32
    %5 = vector.broadcast %cst : f32 to vector<16x128xf32>
    %6 = arith.maximumf %3, %5 : vector<16x128xf32>
    %7 = arith.mulf %3, %4 : vector<16x128xf32>
    %8 = arith.subf %6, %7 : vector<16x128xf32>
    %9 = math.absf %3 : vector<16x128xf32>
    %cst_4 = arith.constant 0.000000e+00 : f32
    %10 = vector.broadcast %cst_4 : f32 to vector<16x128xf32>
    %11 = arith.subf %10, %9 : vector<16x128xf32>
    %12 = math.exp %11 : vector<16x128xf32>
    %13 = math.log1p %12 : vector<16x128xf32>
    %14 = arith.addf %8, %13 : vector<16x128xf32>
    %cst_5 = arith.constant 0.000000e+00 : f32
    %15 = vector.broadcast %cst_5 : f32 to vector<16x128xf32>
    %16 = arith.subf %15, %14 : vector<16x128xf32>
    %17 = math.exp %16 : vector<16x128xf32>
    %cst_6 = arith.constant 1.000000e+00 : f32
    %18 = vector.broadcast %cst_6 : f32 to vector<16x128xf32>
    %19 = arith.subf %18, %17 : vector<16x128xf32>
    %20 = arith.mulf %19, %19 : vector<16x128xf32>
    %cst_7 = arith.constant 2.500000e-01 : f32
    %21 = vector.broadcast %cst_7 : f32 to vector<16x128xf32>
    %22 = arith.mulf %21, %20 : vector<16x128xf32>
    %23 = arith.mulf %22, %14 : vector<16x128xf32>
    %c1_i32 = arith.constant 1 : i32
    %24 = arith.muli %arg0, %c1_i32 : i32
    %25 = arith.addi %24, %arg1 : i32
    %c16_i32 = arith.constant 16 : i32
    %26 = arith.muli %25, %c16_i32 : i32
    %27 = tpu.iota {dimensions = array<i32: 0>} : vector<16x128xi32>
    %28 = vector.broadcast %26 : i32 to vector<16x128xi32>
    %29 = arith.addi %28, %27 : vector<16x128xi32>
    %30 = tpu.iota {dimensions = array<i32: 1>} : vector<16x128xi32>
    %c128_i32 = arith.constant 128 : i32
    %31 = vector.broadcast %c128_i32 : i32 to vector<16x128xi32>
    %32 = arith.muli %29, %31 : vector<16x128xi32>
    %33 = arith.addi %32, %30 : vector<16x128xi32>
    %c2048_i32 = arith.constant 2048 : i32
    %34 = vector.broadcast %c2048_i32 : i32 to vector<16x128xi32>
    %35 = arith.cmpi slt, %33, %34 : vector<16x128xi32>
    %cst_8 = arith.constant 0.000000e+00 : f32
    %36 = vector.broadcast %cst_8 : f32 to vector<16x128xf32>
    %37 = arith.select %35, %23, %36 : vector<16x128xi1>, vector<16x128xf32>
    %c0_9 = arith.constant 0 : index
    %c0_10 = arith.constant 0 : index
    %38 = vector.load %arg4[%c0_9, %c0_10] : memref<8x128xf32, #tpu.memory_space<vmem>>, vector<8x128xf32>
    %39 = vector.shape_cast %37 : vector<16x128xf32> to vector<2x8x128xf32>
    %cst_11 = arith.constant dense<0.000000e+00> : vector<8x128xf32>
    %40 = vector.multi_reduction <add>, %39, %cst_11 [0] : vector<2x8x128xf32> to vector<8x128xf32>
    %41 = arith.addf %38, %40 : vector<8x128xf32>
    %c0_12 = arith.constant 0 : index
    %c0_13 = arith.constant 0 : index
    %42 = vector.load %arg4[%c0_12, %c0_13] : memref<8x128xf32, #tpu.memory_space<vmem>>, vector<8x128xf32>
    tpu.vector_store %arg4[%c0_12, %c0_13], %41 {strides = array<i32>} : memref<8x128xf32, #tpu.memory_space<vmem>>, vector<8x128xf32>,
    return
  }
  func.func @transform_0(%arg0: i32, %arg1: i32) -> (i32, i32) {
    %c1_i32 = arith.constant 1 : i32
    %0 = arith.muli %arg0, %c1_i32 : i32
    %1 = arith.addi %0, %arg1 : i32
    %c0_i32 = arith.constant 0 : i32
    %c0_i32_0 = arith.constant 0 : i32
    return %1, %c0_i32 : i32, i32
  }
  func.func @transform_1(%arg0: i32, %arg1: i32) -> (i32, i32) {
    %c1_i32 = arith.constant 1 : i32
    %0 = arith.muli %arg0, %c1_i32 : i32
    %1 = arith.addi %0, %arg1 : i32
    %c0_i32 = arith.constant 0 : i32
    %c0_i32_0 = arith.constant 0 : i32
    return %1, %c0_i32 : i32, i32
  }
  func.func @transform_2(%arg0: i32, %arg1: i32) -> (i32, i32) {
    %c0_i32 = arith.constant 0 : i32
    %c0_i32_0 = arith.constant 0 : i32
    return %arg0, %c0_i32 : i32, i32
  }
}

</mosaic_0001>

<llo_original>
// kernel: tpu_custom_call.1
$region0: #{tpu_custom_call.1}
  #allocation0 [shape = 'u32[]', space=smem, size = 0x4, offset = 0x4, fixed_abs, tag = 'smem constant byte address 0x4 - core index']
  #allocation1 [shape = 'u32[144,128]{1,0:T(1,128)}', space=vmem, size = 0x12000, scoped, tag = 'internal scratch']
  %s0 = inlined_call_operand.hbm [shape: f32[32,128], index: 0, kind: input, shape index: {}]
  %s1 = inlined_call_operand.hbm [shape: f32[32,128], index: 1, kind: input, shape index: {}]
  %s2 = inlined_call_operand.hbm [shape: f32[16,128], index: 2, kind: output, shape index: {}]
  %s3 = sld [smem:[#allocation0]]
  $region53: #{tpu_custom_call.1} parent=0
    _
  %s5 = ssub.s32 1, %s3
  %s6 = scalar_select 0, %s5, %s3
  $region1: #{tpu_custom_call.1} parent=0
    #allocation2 [shape = 'u8[16384]{0}', space=vmem, size = 0x4000, scoped, tag = 'input window, operand 0']
    #allocation3 [shape = 's32[2]{0}', space=sflag, size = 0x8, scoped, tag = 'scoped memory for tpu_custom_call.1']
    #allocation4 [shape = 's32[2]{0}', space=sflag, size = 0x8, scoped, tag = 'scoped memory for tpu_custom_call.1']
    #allocation5 [shape = 'u8[16384]{0}', space=vmem, size = 0x4000, scoped, tag = 'input window, operand 1']
    #allocation6 [shape = 's32[2]{0}', space=sflag, size = 0x8, scoped, tag = 'scoped memory for tpu_custom_call.1']
    #allocation7 [shape = 'u8[8192]{0}', space=vmem, size = 0x2000, scoped, tag = 'output window, operand 0']
    %7 = vsyncpa [#allocation3], 0
    %s8 = scalar_lea.sflag [#allocation3], 1
    %9 = vsyncpa %s8, 0
    %10 = vsyncpa [#allocation6], 0
    %s11 = scalar_lea.sflag [#allocation6], 1
    %12 = vsyncpa %s11, 0
    %13 = vsyncpa [#allocation4], 0
    %s14 = scalar_lea.sflag [#allocation4], 1
    %15 = vsyncpa %s14, 0
    loop: start=0, step=1, limit=4
    $region2: #{tpu_custom_call.1} parent=1 // loop_pre_header
      _
    $region3: #{tpu_custom_call.1} parent=1 // loop_header
      %s17 = sphi 0, %s21
      %p18 = scmp.ge.s32.totalorder %s17, 4
      %s24 = sphi 0, %s36
      %s25 = sphi 0, %s32
      %s26 = sphi 0, %s24
      %s27 = sphi 0, %s25
      %s28 = sphi 0, %s26
      %s29 = sphi 0, %s27
      %s41 = sphi 0, %s43
      %s44 = sphi 0, %s41
      %s45 = sphi 0, %s44
      %s61 = sphi 0, %s45
      %s69 = sphi 0, %s71
      %s72 = sphi 0, %s69
      %s73 = sphi 0, %s72
      %s89 = sphi 0, %s73
      %s95 = sphi 0, %s97
      %s98 = sphi 0, %s95
      %s99 = sphi 0, %s98
      %s115 = sphi 0, %s99
    $region4: #{tpu_custom_call.1} parent=1 // loop_header_branch
      %20 = sbr.rel (%p18) target = $region8
    $region5: #{tpu_custom_call.1} parent=1 // loop_body
      %s22 = ssub.s32 %s17, 1
      %s23 = ssub.s32 %s17, 2
      %s30 = sadd.s32 1, %s25
      %p31 = scmp.ge.s32.totalorder %s30, 1
      %s32 = scalar_select %p31, 0, %s30
      %s33 = sadd.s32 1, %s24
      %s34 = scalar_select %p31, %s33, %s24
      %p35 = scmp.ge.s32.totalorder %s34, 2
      %s36 = scalar_select %p35, 0, %s34
      %s37 = sadd.s32 %s24, %s25
      %s38 = sadd.s32 %s36, %s32
      %s39 = ssub.s32 %s37, %s38
      %p40 = scmp.eq.s32.totalorder %s39, 0
      %s42 = sadd.s32 %s41, 1
      %s43 = scalar_select %p40, %s41, %s42
      %p46 = pneg %p40
      %p47 = scmp.eq.s32.totalorder %s17, 1
      %p48 = por %p46, %p47
      %p49 = scmp.ne.s32.totalorder %s41, %s44
      %p50 = scmp.eq.s32.totalorder %s17, 0
      %p51 = por %p49, %p50
      %p52 = scmp.ne.s32.totalorder %s41, %s44
      %p53 = scmp.eq.s32.totalorder %s22, 1
      %p54 = por %p52, %p53
      %p55 = scmp.ne.s32.totalorder %s44, %s45
      %p56 = scmp.eq.s32.totalorder %s22, 0
      %p57 = por %p55, %p56
      %p58 = scmp.ne.s32.totalorder %s44, %s45
      %p59 = scmp.eq.s32.totalorder %s23, 1
      %p60 = por %p58, %p59
      %p62 = scmp.ne.s32.totalorder %s45, %s61
      %p63 = scmp.eq.s32.totalorder %s23, 0
      %p64 = por %p62, %p63
      %s65 = sadd.s32 %s24, %s25
      %s66 = sadd.s32 %s36, %s32
      %s67 = ssub.s32 %s65, %s66
      %p68 = scmp.eq.s32.totalorder %s67, 0
      %s70 = sadd.s32 %s69, 1
      %s71 = scalar_select %p68, %s69, %s70
      %p74 = pneg %p68
      %p75 = scmp.eq.s32.totalorder %s17, 1
      %p76 = por %p74, %p75
      %p77 = scmp.ne.s32.totalorder %s69, %s72
      %p78 = scmp.eq.s32.totalorder %s17, 0
      %p79 = por %p77, %p78
      %p80 = scmp.ne.s32.totalorder %s69, %s72
      %p81 = scmp.eq.s32.totalorder %s22, 1
      %p82 = por %p80, %p81
      %p83 = scmp.ne.s32.totalorder %s72, %s73
      %p84 = scmp.eq.s32.totalorder %s22, 0
      %p85 = por %p83, %p84
      %p86 = scmp.ne.s32.totalorder %s72, %s73
      %p87 = scmp.eq.s32.totalorder %s23, 1
      %p88 = por %p86, %p87
      %p90 = scmp.ne.s32.totalorder %s73, %s89
      %p91 = scmp.eq.s32.totalorder %s23, 0
      %p92 = por %p90, %p91
      %s93 = ssub.s32 %s24, %s36
      %p94 = scmp.eq.s32.totalorder %s93, 0
      %s96 = sadd.s32 %s95, 1
      %s97 = scalar_select %p94, %s95, %s96
      %p100 = pneg %p94
      %p101 = scmp.eq.s32.totalorder %s17, 1
      %p102 = por %p100, %p101
      %p103 = scmp.ne.s32.totalorder %s95, %s98
      %p104 = scmp.eq.s32.totalorder %s17, 0
      %p105 = por %p103, %p104
      %p106 = scmp.ne.s32.totalorder %s95, %s98
      %p107 = scmp.eq.s32.totalorder %s22, 1
      %p108 = por %p106, %p107
      %p109 = scmp.ne.s32.totalorder %s98, %s99
      %p110 = scmp.eq.s32.totalorder %s22, 0
      %p111 = por %p109, %p110
      %p112 = scmp.ne.s32.totalorder %s98, %s99
      %p113 = scmp.eq.s32.totalorder %s23, 1
      %p114 = por %p112, %p113
      %p116 = scmp.ne.s32.totalorder %s99, %s115
      %p117 = scmp.eq.s32.totalorder %s23, 0
      %p118 = por %p116, %p117
      %p119 = scmp.le.s32.totalorder 1, %s17
      %p120 = scmp.lt.s32.totalorder %s17, 3
      %p121 = pnand %p119, %p120
      %p122 = pneg %p121
      // Predicated region
      $region9: #{tpu_custom_call.1} parent=5 // pred_check
        _
      $region10: #{tpu_custom_call.1} parent=5 // pred_check_branch
        %124 = sbr.rel (%p121) target = $region12
      $region11: #{tpu_custom_call.1} parent=5 // pred_region
        %s125 = ssub.s32 %s17, 1
      $region12: #{tpu_custom_call.1} parent=5 // pred_fallthru
        _
      %p126 = scmp.lt.s32.totalorder %s17, 2
      // Predicated region
      $region13: #{tpu_custom_call.1} parent=5 // pred_check
        %p127 = pneg %p126
      $region14: #{tpu_custom_call.1} parent=5 // pred_check_branch
        %129 = sbr.rel (%p127) target = $region16
      $region15: #{tpu_custom_call.1} parent=5 // pred_region
        // Predicated region
        $region17: #{tpu_custom_call.1} parent=15 // pred_check
          %p130 = pneg %p51
        $region18: #{tpu_custom_call.1} parent=15 // pred_check_branch
          %132 = sbr.rel (%p130) target = $region20
        $region19: #{tpu_custom_call.1} parent=15 // pred_region
          %s133 = sand.u32 %s41, 1
          %s134 = scalar_lea.sflag [#allocation3], %s133
          %s135 = sand.u32 %s41, 1
          %s136 = smul.addr %s135, 16
          %s137 = scalar_lea.vmem [#allocation2], %s136
          %s138 = sadd.s32 %s24, %s25
          %s139 = smul.u32 2, %s138
          %s141 = ssub.s32 256, 256
          %142 = vsyncadd %s134, %s141
          %s143 = smul.addr %s139, 128
          %s144 = scalar_lea.hbm %s0, %s143
          %s145 = sshll.u32 %s137, 4
          %s146 = int_to_ptr.vmem [resolvable:$true] %s145
          %151 = dma.hbm_to_vmem [thread:$0]  %s144, 256, %s146, %s134, 128, 128, 8
        $region20: #{tpu_custom_call.1} parent=15 // pred_fallthru
          _
        // Predicated region
        $region21: #{tpu_custom_call.1} parent=15 // pred_check
          %p152 = pneg %p79
        $region22: #{tpu_custom_call.1} parent=15 // pred_check_branch
          %154 = sbr.rel (%p152) target = $region24
        $region23: #{tpu_custom_call.1} parent=15 // pred_region
          %s155 = sand.u32 %s69, 1
          %s156 = scalar_lea.sflag [#allocation6], %s155
          %s157 = sand.u32 %s69, 1
          %s158 = smul.addr %s157, 16
          %s159 = scalar_lea.vmem [#allocation5], %s158
          %s160 = sadd.s32 %s24, %s25
          %s161 = smul.u32 2, %s160
          %s163 = ssub.s32 256, 256
          %164 = vsyncadd %s156, %s163
          %s165 = smul.addr %s161, 128
          %s166 = scalar_lea.hbm %s1, %s165
          %s167 = sshll.u32 %s159, 4
          %s168 = int_to_ptr.vmem [resolvable:$true] %s167
          %173 = dma.hbm_to_vmem [thread:$0]  %s166, 256, %s168, %s156, 128, 128, 8
        $region24: #{tpu_custom_call.1} parent=15 // pred_fallthru
          _
      $region16: #{tpu_custom_call.1} parent=5 // pred_fallthru
        _
      %p174 = scmp.le.s32.totalorder 1, %s17
      %p175 = scmp.lt.s32.totalorder %s17, 3
      %p176 = pnand %p174, %p175
      %p177 = pneg %p176
      // Predicated region
      $region25: #{tpu_custom_call.1} parent=5 // pred_check
        _
      $region26: #{tpu_custom_call.1} parent=5 // pred_check_branch
        %179 = sbr.rel (%p176) target = $region28
      $region27: #{tpu_custom_call.1} parent=5 // pred_region
        %s180 = ssub.s32 %s17, 1
        %s181 = sand.u32 %s44, 1
        %s182 = scalar_lea.sflag [#allocation3], %s181
        %s183 = sand.u32 %s44, 1
        %s184 = smul.addr %s183, 16
        %s185 = scalar_lea.vmem [#allocation2], %s184
        // Predicated region
        $region29: #{tpu_custom_call.1} parent=27 // pred_check
          %p186 = pneg %p57
        $region30: #{tpu_custom_call.1} parent=27 // pred_check_branch
          %188 = sbr.rel (%p186) target = $region32
        $region31: #{tpu_custom_call.1} parent=27 // pred_region
          %189 = dma.done %s182, 256
        $region32: #{tpu_custom_call.1} parent=27 // pred_fallthru
          _
        %s190 = sand.u32 %s72, 1
        %s191 = scalar_lea.sflag [#allocation6], %s190
        %s192 = sand.u32 %s72, 1
        %s193 = smul.addr %s192, 16
        %s194 = scalar_lea.vmem [#allocation5], %s193
        // Predicated region
        $region33: #{tpu_custom_call.1} parent=27 // pred_check
          %p195 = pneg %p85
        $region34: #{tpu_custom_call.1} parent=27 // pred_check_branch
          %197 = sbr.rel (%p195) target = $region36
        $region35: #{tpu_custom_call.1} parent=27 // pred_region
          %198 = dma.done %s191, 256
        $region36: #{tpu_custom_call.1} parent=27 // pred_fallthru
          _
        %s199 = sand.u32 %s44, 1
        %s200 = scalar_lea.sflag [#allocation3], %s199
        %s201 = sand.u32 %s44, 1
        %s202 = smul.addr %s201, 16
        %s203 = scalar_lea.vmem [#allocation2], %s202
        %p204 = pneg %p57
        %p205 = pneg %p54
        %s206 = sand.u32 %s72, 1
        %s207 = scalar_lea.sflag [#allocation6], %s206
        %s208 = sand.u32 %s72, 1
        %s209 = smul.addr %s208, 16
        %s210 = scalar_lea.vmem [#allocation5], %s209
        %p211 = pneg %p85
        %p212 = pneg %p82
        %p213 = pneg %p111
        %p214 = pneg %p108
        %s215 = sand.u32 %s98, 1
        %s216 = scalar_lea.sflag [#allocation4], %s215
        %s217 = sand.u32 %s98, 1
        %s218 = smul.addr %s217, 8
        %s219 = scalar_lea.vmem [#allocation7], %s218
        %s220 = sadd.s32 %s26, %s27
        %s221 = smul.u32 2, %s220
        %s222 = sadd.s32 %s26, %s27
        %s223 = smul.u32 2, %s222
        %p224 = scmp.eq.s32.totalorder %s27, 0
        // Predicated region
        $region37: #{tpu_custom_call.1} parent=27 // pred_check
          %p225 = pneg %p224
        $region38: #{tpu_custom_call.1} parent=27 // pred_check_branch
          %227 = sbr.rel (%p225) target = $region40
        $region39: #{tpu_custom_call.1} parent=27 // pred_region
          %228 = vst [vmem:[%s219] sm:$0xff] 0.0
        $region40: #{tpu_custom_call.1} parent=27 // pred_fallthru
          _
        %v229 = vld [vmem:[%s185] sm:$0xff]
        %v230 = vld [vmem:[%s185 + $0x8] sm:$0xff]
        %v231 = vld [vmem:[%s194] sm:$0xff]
        %v232 = vld [vmem:[%s194 + $0x8] sm:$0xff]
        %v233 = vmax.f32 %v229, 0.0
        %v234 = vmax.f32 %v230, 0.0
        %v235 = vmul.f32 %v229, %v231
        %v236 = vmul.f32 %v230, %v232
        %v237 = vsub.f32 %v233, %v235
        %v238 = vsub.f32 %v234, %v236
        %v239 = vand.u32 2147483647, %v229
        %v240 = vand.u32 2147483647, %v230
        %v241 = vsub.f32 0.0, %v239
        %v242 = vsub.f32 0.0, %v240
        %v243 = vmul.f32 %v241, 1.442695
        %v244 = vpow.pop %v243
        %v245 = vmul.f32 %v242, 1.442695
        %v246 = vpow.pop %v245
        %v247 = vadd.f32 %v244, 1.0
        %v248 = vlog2.pop %v247
        %v249 = vmul.f32 %v248, 0.6931472
        %v250 = vmul.f32 -0.5, %v244
        %v251 = vadd.f32 %v250, 1.0
        %v252 = vmul.f32 %v251, %v244
        %v253 = vand.u32 2147483647, %v244
        %vm254 = vcmp.lt.f32.partialorder %v253, 0.0004427343
        %v255 = vsel %vm254, %v252, %v249
        %v256 = vadd.f32 %v246, 1.0
        %v257 = vlog2.pop %v256
        %v258 = vmul.f32 %v257, 0.6931472
        %v259 = vmul.f32 -0.5, %v246
        %v260 = vadd.f32 %v259, 1.0
        %v261 = vmul.f32 %v260, %v246
        %v262 = vand.u32 2147483647, %v246
        %vm263 = vcmp.lt.f32.partialorder %v262, 0.0004427343
        %v264 = vsel %vm263, %v261, %v258
        %v265 = vadd.f32 %v237, %v255
        %v266 = vadd.f32 %v238, %v264
        %v267 = vsub.f32 0.0, %v265
        %v268 = vsub.f32 0.0, %v266
        %v269 = vmul.f32 %v267, 1.442695
        %v270 = vpow.pop %v269
        %v271 = vmul.f32 %v268, 1.442695
        %v272 = vpow.pop %v271
        %v273 = vsub.f32 1.0, %v270
        %v274 = vsub.f32 1.0, %v272
        %v275 = vmul.f32 %v273, %v273
        %v276 = vmul.f32 %v274, %v274
        %v277 = vmul.f32 %v275, 0.25
        %v278 = vmul.f32 %v276, 0.25
        %v279 = vmul.f32 %v277, %v265
        %v280 = vmul.f32 %v278, %v266
        %s281 = sadd.s32 %s26, %s27
        %s282 = smul.u32 %s281, 16
        %v283 = vlaneseq
        %v284 = vshrl.u32 %v283, 7
        %v285 = vadd.s32 %v284, 8
        %v286 = vstv %s282
        %v287 = vadd.s32 %v286, %v284
        %v288 = vadd.s32 %v286, %v285
        %v289 = vlaneseq
        %v290 = vand.u32 %v289, 127
        %v291 = vmul.u32 %v287, 128
        %v292 = vmul.u32 %v288, 128
        %v293 = vadd.s32 %v291, %v290
        %v294 = vadd.s32 %v292, %v290
        %vm295 = vcmp.lt.s32.totalorder %v293, 2048
        %vm296 = vcmp.lt.s32.totalorder %v294, 2048
        %v297 = vsel %vm295, %v279, 0.0
        %v298 = vsel %vm296, %v280, 0.0
        %v299 = vld [vmem:[%s219] sm:$0xff]
        %v300 = vadd.f32 %v297, %v298
        %v301 = vadd.f32 %v299, %v300
        %302 = vst [vmem:[%s219] sm:$0xff] %v301
        %s303 = sand.u32 %s98, 1
        %s304 = scalar_lea.sflag [#allocation4], %s303
        %s305 = sand.u32 %s98, 1
        %s306 = smul.addr %s305, 8
        %s307 = scalar_lea.vmem [#allocation7], %s306
        // Predicated region
        $region41: #{tpu_custom_call.1} parent=27 // pred_check
          %p308 = pneg %p108
        $region42: #{tpu_custom_call.1} parent=27 // pred_check_branch
          %310 = sbr.rel (%p308) target = $region44
        $region43: #{tpu_custom_call.1} parent=27 // pred_region
          %s312 = ssub.s32 128, 128
          %313 = vsyncadd %s304, %s312
          %s314 = smul.addr %s26, 128
          %s315 = scalar_lea.hbm %s2, %s314
          %s317 = sshll.u32 %s307, 4
          %s318 = int_to_ptr.vmem [resolvable:$true] %s317
          %320 = dma.vmem_to_hbm [thread:$0]  %s318, 128, %s315, %s304
        $region44: #{tpu_custom_call.1} parent=27 // pred_fallthru
          _
      $region28: #{tpu_custom_call.1} parent=5 // pred_fallthru
        _
      %p321 = scmp.le.s32.totalorder 2, %s17
      // Predicated region
      $region45: #{tpu_custom_call.1} parent=5 // pred_check
        %p322 = pneg %p321
      $region46: #{tpu_custom_call.1} parent=5 // pred_check_branch
        %324 = sbr.rel (%p322) target = $region48
      $region47: #{tpu_custom_call.1} parent=5 // pred_region
        %s325 = ssub.s32 %s17, 2
        // Predicated region
        $region49: #{tpu_custom_call.1} parent=47 // pred_check
          %p326 = pneg %p114
        $region50: #{tpu_custom_call.1} parent=47 // pred_check_branch
          %328 = sbr.rel (%p326) target = $region52
        $region51: #{tpu_custom_call.1} parent=47 // pred_region
          %s329 = sand.u32 %s99, 1
          %s330 = scalar_lea.sflag [#allocation4], %s329
          %s331 = sand.u32 %s99, 1
          %s332 = smul.addr %s331, 8
          %s333 = scalar_lea.vmem [#allocation7], %s332
          %334 = dma.done %s330, 128
        $region52: #{tpu_custom_call.1} parent=47 // pred_fallthru
          _
      $region48: #{tpu_custom_call.1} parent=5 // pred_fallthru
        _
    $region6: #{tpu_custom_call.1} parent=1 // loop_footer
      %s21 = sadd.s32 1, %s17
    $region7: #{tpu_custom_call.1} parent=1 // loop_footer_branch
      %16 = sbr.rel target = $region3
    $region8: #{tpu_custom_call.1} parent=1 // loop_exit
      _
    %335 = vsyncpa [#allocation3], 1
    %s336 = scalar_lea.sflag [#allocation3], 1
    %337 = vsyncpa %s336, 1
    %338 = vsyncpa [#allocation6], 1
    %s339 = scalar_lea.sflag [#allocation6], 1
    %340 = vsyncpa %s339, 1
    %341 = vsyncpa [#allocation4], 1
    %s342 = scalar_lea.sflag [#allocation4], 1
    %343 = vsyncpa %s342, 1

</llo_original>
